<compile_context>
chip_gen: v7x
topology: tpu7x:2x2x1
jax: 0.10.0
libtpu: 0.0.40
codegen_flags: <defaults>
</compile_context>

<pallas_src>
import functools

import jax
import jax.numpy as jnp
from jax.experimental import pallas as pl
from jax.experimental.pallas import tpu as pltpu


def _round_up(x: int, m: int) -> int:
    return ((x + m - 1) // m) * m


def _choose_tb(batch: int, max_tb: int) -> int:
    """Pick a batch tile that minimizes padding (multiple of 8 sublanes)."""
    max_tb = max(8, (max_tb // 8) * 8)
    if batch <= max_tb:
        return _round_up(batch, 8)          # single tile, minimal pad
    # Multi-tile: prefer multiples of 128 (MXU row fill), minimize batch pad.
    candidates = [tb for tb in (2048, 1024, 512, 256, 128) if tb <= max_tb]
    if not candidates:
        candidates = [max_tb]
    return min(candidates, key=lambda tb: ((-batch) % tb, -tb))


def actor_kernel(ma_ref, x_ref, w1_ref, b1_ref, w2_ref, b2_ref, w3_ref, b3_ref,
                 o_ref):
    # layer 1: [TB, S] @ [S, 256] + [1, 256] -> relu   (bf16 MXU, f32 acc)
    x = x_ref[...].astype(w1_ref.dtype)
    h1 = jnp.dot(x, w1_ref[...], preferred_element_type=jnp.float32) + b1_ref[...]
    h1 = jnp.maximum(h1, 0.0)
    # layer 2: [TB, 256] @ [256, 256] + [1, 256] -> relu
    h2 = jnp.dot(h1.astype(w2_ref.dtype), w2_ref[...],
                 preferred_element_type=jnp.float32) + b2_ref[...]
    h2 = jnp.maximum(h2, 0.0)
    # layer 3: [TB, 256] @ [256, A] + [1, A] -> max_action * tanh
    h3 = jnp.dot(h2.astype(w3_ref.dtype), w3_ref[...],
                 preferred_element_type=jnp.float32) + b3_ref[...]
    o_ref[...] = (ma_ref[0] * jnp.tanh(h3)).astype(o_ref.dtype)


@functools.partial(jax.jit, static_argnames=("block_b", "core_parallel"))
def actor_forward(state, params, max_action, *, block_b: int = 1024,
                  core_parallel: bool = False):
    """state: [B, state_dim]. params: dict of transposed weights / f32 biases."""
    w1, b1 = params["w1"], params["b1"]
    w2, b2 = params["w2"], params["b2"]
    w3, b3 = params["w3"], params["b3"]

    B, S = state.shape
    H = w1.shape[1]
    A = w3.shape[1]

    TB = _choose_tb(B, block_b)
    B_pad = _round_up(B, TB)

    x = state.astype(jnp.float32)
    if B_pad != B:
        x = jnp.pad(x, ((0, B_pad - B), (0, 0)))

    # max_action as an SMEM scalar (no recompilation per value).
    ma = jnp.full((1,), max_action, dtype=jnp.float32)

    grid = (B_pad // TB,)
    batch_sem = (pltpu.CORE_PARALLEL,) if core_parallel else (pltpu.PARALLEL,)

    out = pl.pallas_call(
        actor_kernel,
        out_shape=jax.ShapeDtypeStruct((B_pad, A), jnp.float32),
        grid_spec=pltpu.PrefetchScalarGridSpec(
            num_scalar_prefetch=0,
            grid=grid,
            in_specs=[
                pl.BlockSpec(memory_space=pltpu.MemorySpace.SMEM),  # max_action
                pl.BlockSpec((TB, S), lambda i: (i, 0)),   # state: tiled on batch
                pl.BlockSpec((S, H), lambda i: (0, 0)),    # w1: VMEM-resident
                pl.BlockSpec((1, H), lambda i: (0, 0)),    # b1 (f32)
                pl.BlockSpec((H, H), lambda i: (0, 0)),    # w2
                pl.BlockSpec((1, H), lambda i: (0, 0)),    # b2 (f32)
                pl.BlockSpec((H, A), lambda i: (0, 0)),    # w3 (natural width)
                pl.BlockSpec((1, A), lambda i: (0, 0)),    # b3 (f32)
            ],
            out_specs=pl.BlockSpec((TB, A), lambda i: (i, 0)),
        ),
        compiler_params=pltpu.CompilerParams(dimension_semantics=batch_sem),
    )(ma, x, w1, b1, w2, b2, w3, b3)

    return out if B_pad == B else out[:B]


def init_actor_params(key, state_dim: int, action_dim: int, hidden: int = 256,
                      dtype=jnp.bfloat16):
    """Deterministic synthetic init matching the nn.Linear shapes.

    PyTorch nn.Linear stores weight as [out, in]; we store the transpose
    [in, out] so the kernel does x @ W.  Weights are cast to `dtype` once here
    (bf16 default = native MXU rate); biases stay f32.
    """
    k1, k2, k3, k4, k5, k6 = jax.random.split(key, 6)
    s1 = 1.0 / jnp.sqrt(state_dim)
    s2 = 1.0 / jnp.sqrt(hidden)
    u = jax.random.uniform
    return {
        "w1": u(k1, (state_dim, hidden), jnp.float32, -s1, s1).astype(dtype),
        "b1": u(k2, (1, hidden), jnp.float32, -s1, s1),
        "w2": u(k3, (hidden, hidden), jnp.float32, -s2, s2).astype(dtype),
        "b2": u(k4, (1, hidden), jnp.float32, -s2, s2),
        "w3": u(k5, (hidden, action_dim), jnp.float32, -s2, s2).astype(dtype),
        "b3": u(k6, (1, action_dim), jnp.float32, -s2, s2),
    }


def actor_reference(state, params, max_action: float):
    """Pure-JAX reference mirroring the kernel's dtypes (f32 accumulation)."""
    wdt = params["w1"].dtype
    h1 = jnp.maximum(
        jnp.dot(state.astype(wdt), params["w1"],
                preferred_element_type=jnp.float32) + params["b1"], 0.0)
    h2 = jnp.maximum(
        jnp.dot(h1.astype(wdt), params["w2"],
                preferred_element_type=jnp.float32) + params["b2"], 0.0)
    h3 = jnp.dot(h2.astype(wdt), params["w3"],
                 preferred_element_type=jnp.float32) + params["b3"]
    return max_action * jnp.tanh(h3)


if __name__ == "__main__":
    # Small shapes consistent with the module's forward: state -> action.
    batch, state_dim, action_dim = 8, 16, 4
    max_action = 1.0

    key = jax.random.PRNGKey(0)
    kp, kx = jax.random.split(key)
    state = jax.random.normal(kx, (batch, state_dim), jnp.float32)

    # 1) f32 weights: tight-tolerance correctness check (single batch tile).
    params_f32 = init_actor_params(kp, state_dim, action_dim, dtype=jnp.float32)
    out = jax.block_until_ready(actor_forward(state, params_f32, max_action))
    ref = actor_reference(state, params_f32, max_action)
    assert out.shape == (batch, action_dim)
    assert jnp.allclose(out, ref, atol=1e-5, rtol=1e-5), "f32 mismatch vs reference"

    # 2) bf16 weights (default fast path), multi-tile grid with batch padding.
    params_bf16 = init_actor_params(kp, state_dim, action_dim, dtype=jnp.bfloat16)
    batch2 = 200
    state2 = jax.random.normal(jax.random.PRNGKey(1), (batch2, state_dim),
                               jnp.float32)
    out2 = jax.block_until_ready(
        actor_forward(state2, params_bf16, max_action, block_b=64))
    ref2 = actor_reference(state2, params_bf16, max_action)
    assert out2.shape == (batch2, action_dim)
    assert jnp.allclose(out2, ref2, atol=1e-2, rtol=1e-2), \
        "bf16 mismatch vs reference (tiled)"

    # 3) Different max_action reuses the same compilation (SMEM scalar path).
    out3 = jax.block_until_ready(actor_forward(state, params_f32, 2.5))
    ref3 = actor_reference(state, params_f32, 2.5)
    assert jnp.allclose(out3, ref3, atol=1e-5, rtol=1e-5), "max_action mismatch"

    print("KERNEL_OK")
</pallas_src>

<mosaic_0001>
module attributes {stable_mosaic.version = 11 : i64} {
  func.func @actor_kernel(%arg0: i32, %arg1: memref<1xf32, #tpu.memory_space<smem>>, %arg2: memref<8x16xf32, #tpu.memory_space<vmem>>, %arg3: memref<16x256xf32, #tpu.memory_space<vmem>>, %arg4: memref<1x256xf32, #tpu.memory_space<vmem>>, %arg5: memref<256x256xf32, #tpu.memory_space<vmem>>, %arg6: memref<1x256xf32, #tpu.memory_space<vmem>>, %arg7: memref<256x4xf32, #tpu.memory_space<vmem>>, %arg8: memref<1x4xf32, #tpu.memory_space<vmem>>, %arg9: memref<8x4xf32, #tpu.memory_space<vmem>>) attributes {dimension_semantics = [#tpu.dimension_semantics<parallel>], iteration_bounds = array<i64: 1>, scalar_prefetch = 0 : i64, scratch_operands = 0 : i64, tpu.core_type = #tpu.core_type<tc>, window_params = [{transform_indices = @transform_0, window_bounds = array<i64: 1>}, {transform_indices = @transform_1, window_bounds = array<i64: 8, 16>}, {pipeline_mode = #tpu.pipeline_mode<synchronous>, transform_indices = @transform_2, window_bounds = array<i64: 16, 256>}, {pipeline_mode = #tpu.pipeline_mode<synchronous>, transform_indices = @transform_3, window_bounds = array<i64: 1, 256>}, {pipeline_mode = #tpu.pipeline_mode<synchronous>, transform_indices = @transform_4, window_bounds = array<i64: 256, 256>}, {pipeline_mode = #tpu.pipeline_mode<synchronous>, transform_indices = @transform_5, window_bounds = array<i64: 1, 256>}, {pipeline_mode = #tpu.pipeline_mode<synchronous>, transform_indices = @transform_6, window_bounds = array<i64: 256, 4>}, {pipeline_mode = #tpu.pipeline_mode<synchronous>, transform_indices = @transform_7, window_bounds = array<i64: 1, 4>}, {transform_indices = @transform_8, window_bounds = array<i64: 8, 4>}]} {
    %c0 = arith.constant 0 : index
    %c0_0 = arith.constant 0 : index
    %0 = vector.load %arg2[%c0, %c0_0] : memref<8x16xf32, #tpu.memory_space<vmem>>, vector<8x16xf32>
    %c0_1 = arith.constant 0 : index
    %c0_2 = arith.constant 0 : index
    %1 = vector.load %arg3[%c0_1, %c0_2] : memref<16x256xf32, #tpu.memory_space<vmem>>, vector<16x256xf32>
    %cst = arith.constant dense<0.000000e+00> : vector<8x256xf32>
    %2 = tpu.matmul %0, %1, %cst {dimension_numbers = #tpu.dot_dimension_numbers<[1], [0], [0], [1], [0, 0, 1, 1], [], []>} : vector<8x16xf32>, vector<16x256xf32>, vector<8x256xf32> -> vector<8x256xf32>
    %c0_3 = arith.constant 0 : index
    %c0_4 = arith.constant 0 : index
    %3 = vector.load %arg4[%c0_3, %c0_4] : memref<1x256xf32, #tpu.memory_space<vmem>>, vector<1x256xf32>
    %4 = vector.broadcast %3 : vector<1x256xf32> to vector<8x256xf32>
    %5 = arith.addf %2, %4 : vector<8x256xf32>
    %cst_5 = arith.constant 0.000000e+00 : f32
    %6 = vector.broadcast %cst_5 : f32 to vector<8x256xf32>
    %7 = arith.maximumf %5, %6 : vector<8x256xf32>
    %c0_6 = arith.constant 0 : index
    %c0_7 = arith.constant 0 : index
    %8 = vector.load %arg5[%c0_6, %c0_7] : memref<256x256xf32, #tpu.memory_space<vmem>>, vector<256x256xf32>
    %cst_8 = arith.constant dense<0.000000e+00> : vector<8x256xf32>
    %9 = tpu.matmul %7, %8, %cst_8 {dimension_numbers = #tpu.dot_dimension_numbers<[1], [0], [0], [1], [0, 0, 1, 1], [], []>} : vector<8x256xf32>, vector<256x256xf32>, vector<8x256xf32> -> vector<8x256xf32>
    %c0_9 = arith.constant 0 : index
    %c0_10 = arith.constant 0 : index
    %10 = vector.load %arg6[%c0_9, %c0_10] : memref<1x256xf32, #tpu.memory_space<vmem>>, vector<1x256xf32>
    %11 = vector.broadcast %10 : vector<1x256xf32> to vector<8x256xf32>
    %12 = arith.addf %9, %11 : vector<8x256xf32>
    %cst_11 = arith.constant 0.000000e+00 : f32
    %13 = vector.broadcast %cst_11 : f32 to vector<8x256xf32>
    %14 = arith.maximumf %12, %13 : vector<8x256xf32>
    %c0_12 = arith.constant 0 : index
    %c0_13 = arith.constant 0 : index
    %15 = vector.load %arg7[%c0_12, %c0_13] : memref<256x4xf32, #tpu.memory_space<vmem>>, vector<256x4xf32>
    %cst_14 = arith.constant dense<0.000000e+00> : vector<8x4xf32>
    %16 = tpu.matmul %14, %15, %cst_14 {dimension_numbers = #tpu.dot_dimension_numbers<[1], [0], [0], [1], [0, 0, 1, 1], [], []>} : vector<8x256xf32>, vector<256x4xf32>, vector<8x4xf32> -> vector<8x4xf32>
    %c0_15 = arith.constant 0 : index
    %c0_16 = arith.constant 0 : index
    %17 = vector.load %arg8[%c0_15, %c0_16] : memref<1x4xf32, #tpu.memory_space<vmem>>, vector<1x4xf32>
    %18 = vector.broadcast %17 : vector<1x4xf32> to vector<8x4xf32>
    %19 = arith.addf %16, %18 : vector<8x4xf32>
    %c0_17 = arith.constant 0 : index
    %20 = memref.load %arg1[%c0_17] : memref<1xf32, #tpu.memory_space<smem>>
    %21 = math.tanh %19 : vector<8x4xf32>
    %22 = vector.broadcast %20 : f32 to vector<8x4xf32>
    %23 = arith.mulf %22, %21 : vector<8x4xf32>
    %c0_18 = arith.constant 0 : index
    %c0_19 = arith.constant 0 : index
    %24 = vector.load %arg9[%c0_18, %c0_19] : memref<8x4xf32, #tpu.memory_space<vmem>>, vector<8x4xf32>
    tpu.vector_store %arg9[%c0_18, %c0_19], %23 {strides = array<i32>} : memref<8x4xf32, #tpu.memory_space<vmem>>, vector<8x4xf32>,
    return
  }
  func.func @transform_0(%arg0: i32) -> i32 {
    %c0_i32 = arith.constant 0 : i32
    %c0_i32_0 = arith.constant 0 : i32
    return %c0_i32 : i32
  }
  func.func @transform_1(%arg0: i32) -> (i32, i32) {
    %c0_i32 = arith.constant 0 : i32
    %c0_i32_0 = arith.constant 0 : i32
    return %arg0, %c0_i32 : i32, i32
  }
  func.func @transform_2(%arg0: i32) -> (i32, i32) {
    %c0_i32 = arith.constant 0 : i32
    %c0_i32_0 = arith.constant 0 : i32
    %c0_i32_1 = arith.constant 0 : i32
    return %c0_i32, %c0_i32_0 : i32, i32
  }
  func.func @transform_3(%arg0: i32) -> (i32, i32) {
    %c0_i32 = arith.constant 0 : i32
    %c0_i32_0 = arith.constant 0 : i32
    %c0_i32_1 = arith.constant 0 : i32
    return %c0_i32, %c0_i32_0 : i32, i32
  }
  func.func @transform_4(%arg0: i32) -> (i32, i32) {
    %c0_i32 = arith.constant 0 : i32
    %c0_i32_0 = arith.constant 0 : i32
    %c0_i32_1 = arith.constant 0 : i32
    return %c0_i32, %c0_i32_0 : i32, i32
  }
  func.func @transform_5(%arg0: i32) -> (i32, i32) {
    %c0_i32 = arith.constant 0 : i32
    %c0_i32_0 = arith.constant 0 : i32
    %c0_i32_1 = arith.constant 0 : i32
    return %c0_i32, %c0_i32_0 : i32, i32
  }
  func.func @transform_6(%arg0: i32) -> (i32, i32) {
    %c0_i32 = arith.constant 0 : i32
    %c0_i32_0 = arith.constant 0 : i32
    %c0_i32_1 = arith.constant 0 : i32
    return %c0_i32, %c0_i32_0 : i32, i32
  }
  func.func @transform_7(%arg0: i32) -> (i32, i32) {
    %c0_i32 = arith.constant 0 : i32
    %c0_i32_0 = arith.constant 0 : i32
    %c0_i32_1 = arith.constant 0 : i32
    return %c0_i32, %c0_i32_0 : i32, i32
  }
  func.func @transform_8(%arg0: i32) -> (i32, i32) {
    %c0_i32 = arith.constant 0 : i32
    %c0_i32_0 = arith.constant 0 : i32
    return %arg0, %c0_i32 : i32, i32
  }
}

</mosaic_0001>

<llo_original>
// kernel: actor_forward.1
$region0: #{actor_forward.1}
  #allocation0 [shape = 'u32[]', space=smem, size = 0x4, offset = 0x4, fixed_abs, tag = 'smem constant byte address 0x4 - core index']
  #allocation1 [shape = 'u32[144,128]{1,0:T(1,128)}', space=vmem, size = 0x12000, scoped, tag = 'internal scratch']
  #allocation2 [shape = 'f32[1]{0:T(128)S(6)}', space=smem, size = 0x200, scoped, tag = 'scoped memory for actor_forward.1']
  %s0 = inlined_call_operand.<no memory space> [shape: f32[1], index: 0, kind: input, shape index: {}]
  %s1 = inlined_call_operand.vmem [shape: f32[8,16], index: 1, kind: input, shape index: {}]
  %s2 = inlined_call_operand.vmem [shape: f32[16,256], index: 2, kind: input, shape index: {}]
  %s3 = inlined_call_operand.vmem [shape: f32[1,256], index: 3, kind: input, shape index: {}]
  %s4 = inlined_call_operand.hbm [shape: f32[256,256], index: 4, kind: input, shape index: {}]
  %s5 = inlined_call_operand.vmem [shape: f32[1,256], index: 5, kind: input, shape index: {}]
  %s6 = inlined_call_operand.vmem [shape: f32[256,4], index: 6, kind: input, shape index: {}]
  %s7 = inlined_call_operand.vmem [shape: f32[1,4], index: 7, kind: input, shape index: {}]
  %s8 = inlined_call_operand.vmem [shape: f32[8,4], index: 8, kind: output, shape index: {}]
  %s9 = sld [smem:[#allocation0]]
  $region46: #{actor_forward.1} parent=0
    _
  %s11 = ssub.s32 1, %s9
  %s12 = scalar_select 0, %s11, %s9
  %13 = sst [smem:[#allocation2]] %s0
  $region1: #{actor_forward.1} parent=0
    #allocation3 [shape = 'u8[262144]{0}', space=vmem, size = 0x40000, scoped, tag = 'input window, operand 4, single buffered']
    #allocation4 [shape = 's32[1]{0}', space=sflag, size = 0x4, scoped, tag = 'scoped memory for actor_forward.1']
    %14 = vsyncpa [#allocation4], 0
    // Predicated region
    $region2: #{actor_forward.1} parent=1 // pred_check
      _
    $region3: #{actor_forward.1} parent=1 // pred_check_branch
      %16 = sbr.rel (0) target = $region5
    $region4: #{actor_forward.1} parent=1 // pred_region
      _
    $region5: #{actor_forward.1} parent=1 // pred_fallthru
      _
    // Predicated region
    $region6: #{actor_forward.1} parent=1 // pred_check
      _
    $region7: #{actor_forward.1} parent=1 // pred_check_branch
      %18 = sbr.rel (0) target = $region9
    $region8: #{actor_forward.1} parent=1 // pred_region
      _
    $region9: #{actor_forward.1} parent=1 // pred_fallthru
      _
    // Predicated region
    $region10: #{actor_forward.1} parent=1 // pred_check
      _
    $region11: #{actor_forward.1} parent=1 // pred_check_branch
      %20 = sbr.rel (0) target = $region13
    $region12: #{actor_forward.1} parent=1 // pred_region
      _
    $region13: #{actor_forward.1} parent=1 // pred_fallthru
      _
    // Predicated region
    $region14: #{actor_forward.1} parent=1 // pred_check
      _
    $region15: #{actor_forward.1} parent=1 // pred_check_branch
      %22 = sbr.rel (0) target = $region17
    $region16: #{actor_forward.1} parent=1 // pred_region
      _
    $region17: #{actor_forward.1} parent=1 // pred_fallthru
      _
    // Predicated region
    $region18: #{actor_forward.1} parent=1 // pred_check
      _
    $region19: #{actor_forward.1} parent=1 // pred_check_branch
      %24 = sbr.rel (0) target = $region21
    $region20: #{actor_forward.1} parent=1 // pred_region
      %s26 = ssub.s32 8192, 8192
      %27 = vsyncadd [#allocation4], %s26
      %s28 = sshll.u32 [#allocation3], 4
      %s29 = int_to_ptr.vmem [resolvable:$true] %s28
      %34 = dma.hbm_to_vmem [thread:$0]  %s4, 8192, %s29, [#allocation4], 256, 256, 16
    $region21: #{actor_forward.1} parent=1 // pred_fallthru
      _
    // Predicated region
    $region22: #{actor_forward.1} parent=1 // pred_check
      _
    $region23: #{actor_forward.1} parent=1 // pred_check_branch
      %36 = sbr.rel (0) target = $region25
    $region24: #{actor_forward.1} parent=1 // pred_region
      _
    $region25: #{actor_forward.1} parent=1 // pred_fallthru
      _
    // Predicated region
    $region26: #{actor_forward.1} parent=1 // pred_check
      _
    $region27: #{actor_forward.1} parent=1 // pred_check_branch
      %38 = sbr.rel (0) target = $region29
    $region28: #{actor_forward.1} parent=1 // pred_region
      _
    $region29: #{actor_forward.1} parent=1 // pred_fallthru
      _
    // Predicated region
    $region30: #{actor_forward.1} parent=1 // pred_check
      _
    $region31: #{actor_forward.1} parent=1 // pred_check_branch
      %40 = sbr.rel (0) target = $region33
    $region32: #{actor_forward.1} parent=1 // pred_region
      _
    $region33: #{actor_forward.1} parent=1 // pred_fallthru
      _
    // Predicated region
    $region34: #{actor_forward.1} parent=1 // pred_check
      _
    $region35: #{actor_forward.1} parent=1 // pred_check_branch
      %42 = sbr.rel (0) target = $region37
    $region36: #{actor_forward.1} parent=1 // pred_region
      %43 = dma.done [#allocation4], 8192
    $region37: #{actor_forward.1} parent=1 // pred_fallthru
      _
    %v44 = vld [vmem:[%s1] sm:$0xff]
    %v45 = vld [vmem:[%s2] sm:$0xff]
    %v46 = vld [vmem:[%s2 + $0x8] sm:$0xff]
    %v47 = vld [vmem:[%s2 + $0x10] sm:$0xff]
    %v48 = vld [vmem:[%s2 + $0x18] sm:$0xff]
    %v49 = vld [vmem:[%s3] sm:$0x3]
    %v51 = vlaneseq
    %v52 = vshrl.u32 %v51, 7
    %v53 = vsub.s32 0, %v52
    %v54 = vrot.slane %v49, %v53
    %v55 = vlaneseq
    %v56 = vshrl.u32 %v55, 7
    %v57 = vsub.s32 1, %v56
    %v58 = vrot.slane %v49, %v57
    %vm61 = vcmask 130048
    %v63 = vsel %vm61, %v44, 0
    %65 = vmatprep.subr.mxu0 %v46
    %66 = vmatpush1.msra.mxu0 %v45
    %67 = vmatprep.subr.mxu0 %v48
    %68 = vmatpush1.msra.mxu0 %v47
    %69 = vmatprep.subr.mxu0 0.0
    %70 = vmatpush1.msra.mxu0 0.0
    %71 = vmatprep.subr.mxu0 0.0
    %72 = vmatpush1.msra.mxu0 0.0
    %73 = vmatprep.subr.mxu0 0.0
    %74 = vmatpush1.msra.mxu0 0.0
    %75 = vmatprep.subr.mxu0 0.0
    %76 = vmatpush1.msra.mxu0 0.0
    %77 = vmatprep.subr.mxu0 0.0
    %78 = vmatpush1.msra.mxu0 0.0
    %79 = vmatprep.subr.mxu0 0.0
    %80 = vmatpush1.msra.mxu0 0.0
    %81 = vmatprep.subr.mxu0 0.0
    %82 = vmatpush1.msra.mxu0 0.0
    %83 = vmatprep.subr.mxu0 0.0
    %84 = vmatpush1.msra.mxu0 0.0
    %85 = vmatprep.subr.mxu0 0.0
    %86 = vmatpush1.msra.mxu0 0.0
    %87 = vmatprep.subr.mxu0 0.0
    %88 = vmatpush1.msra.mxu0 0.0
    %89 = vmatprep.subr.mxu0 0.0
    %90 = vmatpush1.msra.mxu0 0.0
    %91 = vmatprep.subr.mxu0 0.0
    %92 = vmatpush1.msra.mxu0 0.0
    %93 = vmatprep.subr.mxu0 0.0
    %94 = vmatpush1.msra.mxu0 0.0
    %95 = vmatprep.subr.mxu0 0.0
    %96 = vmatpush1.msra.mxu0 0.0
    %97 = vmatprep.subr.mxu0 0.0
    %98 = vmatpush1.msra.mxu0 0.0
    %99 = vmatprep.subr.mxu0 0.0
    %100 = vmatpush1.msra.mxu0 0.0
    %101 = vmatprep.subr.mxu0 0.0
    %102 = vmatpush1.msra.mxu0 0.0
    %103 = vmatprep.subr.mxu0 0.0
    %104 = vmatpush1.msra.mxu0 0.0
    %105 = vmatprep.subr.mxu0 0.0
    %106 = vmatpush1.msra.mxu0 0.0
    %107 = vmatprep.subr.mxu0 0.0
    %108 = vmatpush1.msra.mxu0 0.0
    %109 = vmatprep.subr.mxu0 0.0
    %110 = vmatpush1.msra.mxu0 0.0
    %111 = vmatprep.subr.mxu0 0.0
    %112 = vmatpush1.msra.mxu0 0.0
    %113 = vmatprep.subr.mxu0 0.0
    %114 = vmatpush1.msra.mxu0 0.0
    %115 = vmatprep.subr.mxu0 0.0
    %116 = vmatpush1.msra.mxu0 0.0
    %117 = vmatprep.subr.mxu0 0.0
    %118 = vmatpush1.msra.mxu0 0.0
    %119 = vmatprep.subr.mxu0 0.0
    %120 = vmatpush1.msra.mxu0 0.0
    %121 = vmatprep.subr.mxu0 0.0
    %122 = vmatpush1.msra.mxu0 0.0
    %123 = vmatprep.subr.mxu0 0.0
    %124 = vmatpush1.msra.mxu0 0.0
    %125 = vmatprep.subr.mxu0 0.0
    %126 = vmatpush1.msra.mxu0 0.0
    %127 = vmatprep.subr.mxu0 0.0
    %128 = vmatpush1.msra.mxu0 0.0
    %129 = vmatprep.mubr.f32.mxu0 0.0
    %130 = vmatmul.mubr.f32.gmra.mrb[0].mxu0 %v63
    %v131 = vpop.f32.mrb[0].mxu0
    %v132 = vadd.f32 %v54, %v131
    %v133 = vpop.f32.mrb[0].mxu0
    %v134 = vadd.f32 %v58, %v133
    %135 = vdwg.mxu0
    %v136 = vmax.f32 %v132, 0.0
    %v137 = vmax.f32 %v134, 0.0
    %v138 = vld [vmem:[#allocation3] sm:$0xff]
    %v139 = vld [vmem:[#allocation3 + $0x8] sm:$0xff]
    %v140 = vld [vmem:[#allocation3 + $0x10] sm:$0xff]
    %v141 = vld [vmem:[#allocation3 + $0x18] sm:$0xff]
    %v142 = vld [vmem:[#allocation3 + $0x20] sm:$0xff]
    %v143 = vld [vmem:[#allocation3 + $0x28] sm:$0xff]
    %v144 = vld [vmem:[#allocation3 + $0x30] sm:$0xff]
    %v145 = vld [vmem:[#allocation3 + $0x38] sm:$0xff]
    %v146 = vld [vmem:[#allocation3 + $0x40] sm:$0xff]
    %v147 = vld [vmem:[#allocation3 + $0x48] sm:$0xff]
    %v148 = vld [vmem:[#allocation3 + $0x50] sm:$0xff]
    %v149 = vld [vmem:[#allocation3 + $0x58] sm:$0xff]
    %v150 = vld [vmem:[#allocation3 + $0x60] sm:$0xff]
    %v151 = vld [vmem:[#allocation3 + $0x68] sm:$0xff]
    %v152 = vld [vmem:[#allocation3 + $0x70] sm:$0xff]
    %v153 = vld [vmem:[#allocation3 + $0x78] sm:$0xff]
    %v154 = vld [vmem:[#allocation3 + $0x80] sm:$0xff]
    %v155 = vld [vmem:[#allocation3 + $0x88] sm:$0xff]
    %v156 = vld [vmem:[#allocation3 + $0x90] sm:$0xff]
    %v157 = vld [vmem:[#allocation3 + $0x98] sm:$0xff]
    %v158 = vld [vmem:[#allocation3 + $0xa0] sm:$0xff]
    %v159 = vld [vmem:[#allocation3 + $0xa8] sm:$0xff]
    %v160 = vld [vmem:[#allocation3 + $0xb0] sm:$0xff]
    %v161 = vld [vmem:[#allocation3 + $0xb8] sm:$0xff]
    %v162 = vld [vmem:[#allocation3 + $0xc0] sm:$0xff]
    %v163 = vld [vmem:[#allocation3 + $0xc8] sm:$0xff]
    %v164 = vld [vmem:[#allocation3 + $0xd0] sm:$0xff]
    %v165 = vld [vmem:[#allocation3 + $0xd8] sm:$0xff]
    %v166 = vld [vmem:[#allocation3 + $0xe0] sm:$0xff]
    %v167 = vld [vmem:[#allocation3 + $0xe8] sm:$0xff]
    %v168 = vld [vmem:[#allocation3 + $0xf0] sm:$0xff]
    %v169 = vld [vmem:[#allocation3 + $0xf8] sm:$0xff]
    %v170 = vld [vmem:[#allocation3 + $0x100] sm:$0xff]
    %v171 = vld [vmem:[#allocation3 + $0x108] sm:$0xff]
    %v172 = vld [vmem:[#allocation3 + $0x110] sm:$0xff]
    %v173 = vld [vmem:[#allocation3 + $0x118] sm:$0xff]
    %v174 = vld [vmem:[#allocation3 + $0x120] sm:$0xff]
    %v175 = vld [vmem:[#allocation3 + $0x128] sm:$0xff]
    %v176 = vld [vmem:[#allocation3 + $0x130] sm:$0xff]
    %v177 = vld [vmem:[#allocation3 + $0x138] sm:$0xff]
    %v178 = vld [vmem:[#allocation3 + $0x140] sm:$0xff]
    %v179 = vld [vmem:[#allocation3 + $0x148] sm:$0xff]
    %v180 = vld [vmem:[#allocation3 + $0x150] sm:$0xff]
    %v181 = vld [vmem:[#allocation3 + $0x158] sm:$0xff]
    %v182 = vld [vmem:[#allocation3 + $0x160] sm:$0xff]
    %v183 = vld [vmem:[#allocation3 + $0x168] sm:$0xff]
    %v184 = vld [vmem:[#allocation3 + $0x170] sm:$0xff]
    %v185 = vld [vmem:[#allocation3 + $0x178] sm:$0xff]
    %v186 = vld [vmem:[#allocation3 + $0x180] sm:$0xff]
    %v187 = vld [vmem:[#allocation3 + $0x188] sm:$0xff]
    %v188 = vld [vmem:[#allocation3 + $0x190] sm:$0xff]
    %v189 = vld [vmem:[#allocation3 + $0x198] sm:$0xff]
    %v190 = vld [vmem:[#allocation3 + $0x1a0] sm:$0xff]
    %v191 = vld [vmem:[#allocation3 + $0x1a8] sm:$0xff]
    %v192 = vld [vmem:[#allocation3 + $0x1b0] sm:$0xff]
    %v193 = vld [vmem:[#allocation3 + $0x1b8] sm:$0xff]
    %v194 = vld [vmem:[#allocation3 + $0x1c0] sm:$0xff]
    %v195 = vld [vmem:[#allocation3 + $0x1c8] sm:$0xff]
    %v196 = vld [vmem:[#allocation3 + $0x1d0] sm:$0xff]
    %v197 = vld [vmem:[#allocation3 + $0x1d8] sm:$0xff]
    %v198 = vld [vmem:[#allocation3 + $0x1e0] sm:$0xff]
    %v199 = vld [vmem:[#allocation3 + $0x1e8] sm:$0xff]
    %v200 = vld [vmem:[#allocation3 + $0x1f0] sm:$0xff]
    %v201 = vld [vmem:[#allocation3 + $0x1f8] sm:$0xff]
    %v202 = vld [vmem:[%s5] sm:$0x3]
    %v204 = vlaneseq
    %v205 = vshrl.u32 %v204, 7
    %v206 = vsub.s32 0, %v205
    %v207 = vrot.slane %v202, %v206
    %v208 = vlaneseq
    %v209 = vshrl.u32 %v208, 7
    %v210 = vsub.s32 1, %v209
    %v211 = vrot.slane %v202, %v210
    %214 = vmatprep.subr.mxu0 %v139
    %215 = vmatpush1.msra.mxu0 %v138
    %216 = vmatprep.subr.mxu0 %v141
    %217 = vmatpush1.msra.mxu0 %v140
    %218 = vmatprep.subr.mxu0 %v143
    %219 = vmatpush1.msra.mxu0 %v142
    %220 = vmatprep.subr.mxu0 %v145
    %221 = vmatpush1.msra.mxu0 %v144
    %222 = vmatprep.subr.mxu0 %v147
    %223 = vmatpush1.msra.mxu0 %v146
    %224 = vmatprep.subr.mxu0 %v149
    %225 = vmatpush1.msra.mxu0 %v148
    %226 = vmatprep.subr.mxu0 %v151
    %227 = vmatpush1.msra.mxu0 %v150
    %228 = vmatprep.subr.mxu0 %v153
    %229 = vmatpush1.msra.mxu0 %v152
    %230 = vmatprep.subr.mxu0 %v155
    %231 = vmatpush1.msra.mxu0 %v154
    %232 = vmatprep.subr.mxu0 %v157
    %233 = vmatpush1.msra.mxu0 %v156
    %234 = vmatprep.subr.mxu0 %v159
    %235 = vmatpush1.msra.mxu0 %v158
    %236 = vmatprep.subr.mxu0 %v161
    %237 = vmatpush1.msra.mxu0 %v160
    %238 = vmatprep.subr.mxu0 %v163
    %239 = vmatpush1.msra.mxu0 %v162
    %240 = vmatprep.subr.mxu0 %v165
    %241 = vmatpush1.msra.mxu0 %v164
    %242 = vmatprep.subr.mxu0 %v167
    %243 = vmatpush1.msra.mxu0 %v166
    %244 = vmatprep.subr.mxu0 %v169
    %245 = vmatpush1.msra.mxu0 %v168
    %246 = vmatprep.subr.mxu0 %v171
    %247 = vmatpush1.msra.mxu0 %v170
    %248 = vmatprep.subr.mxu0 %v173
    %249 = vmatpush1.msra.mxu0 %v172
    %250 = vmatprep.subr.mxu0 %v175
    %251 = vmatpush1.msra.mxu0 %v174
    %252 = vmatprep.subr.mxu0 %v177
    %253 = vmatpush1.msra.mxu0 %v176
    %254 = vmatprep.subr.mxu0 %v179
    %255 = vmatpush1.msra.mxu0 %v178
    %256 = vmatprep.subr.mxu0 %v181
    %257 = vmatpush1.msra.mxu0 %v180
    %258 = vmatprep.subr.mxu0 %v183
    %259 = vmatpush1.msra.mxu0 %v182
    %260 = vmatprep.subr.mxu0 %v185
    %261 = vmatpush1.msra.mxu0 %v184
    %262 = vmatprep.subr.mxu0 %v187
    %263 = vmatpush1.msra.mxu0 %v186
    %264 = vmatprep.subr.mxu0 %v189
    %265 = vmatpush1.msra.mxu0 %v188
    %266 = vmatprep.subr.mxu0 %v191
    %267 = vmatpush1.msra.mxu0 %v190
    %268 = vmatprep.subr.mxu0 %v193
    %269 = vmatpush1.msra.mxu0 %v192
    %270 = vmatprep.subr.mxu0 %v195
    %271 = vmatpush1.msra.mxu0 %v194
    %272 = vmatprep.subr.mxu0 %v197
    %273 = vmatpush1.msra.mxu0 %v196
    %274 = vmatprep.subr.mxu0 %v199
    %275 = vmatpush1.msra.mxu0 %v198
    %276 = vmatprep.subr.mxu0 %v201
    %277 = vmatpush1.msra.mxu0 %v200
    %278 = vmatprep.mubr.f32.mxu0 %v137
    %279 = vmatmul.mubr.f32.gmra.mrb[0].mxu0 %v136
    %v280 = vpop.f32.mrb[0].mxu0
    %v281 = vadd.f32 %v207, %v280
    %v282 = vpop.f32.mrb[0].mxu0
    %v283 = vadd.f32 %v211, %v282
    %284 = vdwg.mxu0
    %v285 = vmax.f32 %v281, 0.0
    %v286 = vmax.f32 %v283, 0.0
    %v287 = vld [vmem:[%s6] sm:$0xff]
    %v288 = vld [vmem:[%s6 + $0x8] sm:$0xff]
    %v289 = vld [vmem:[%s6 + $0x10] sm:$0xff]
    %v290 = vld [vmem:[%s6 + $0x18] sm:$0xff]
    %v291 = vld [vmem:[%s6 + $0x20] sm:$0xff]
    %v292 = vld [vmem:[%s6 + $0x28] sm:$0xff]
    %v293 = vld [vmem:[%s6 + $0x30] sm:$0xff]
    %v294 = vld [vmem:[%s6 + $0x38] sm:$0xff]
    %v295 = vld [vmem:[%s6 + $0x40] sm:$0xff]
    %v296 = vld [vmem:[%s6 + $0x48] sm:$0xff]
    %v297 = vld [vmem:[%s6 + $0x50] sm:$0xff]
    %v298 = vld [vmem:[%s6 + $0x58] sm:$0xff]
    %v299 = vld [vmem:[%s6 + $0x60] sm:$0xff]
    %v300 = vld [vmem:[%s6 + $0x68] sm:$0xff]
    %v301 = vld [vmem:[%s6 + $0x70] sm:$0xff]
    %v302 = vld [vmem:[%s6 + $0x78] sm:$0xff]
    %v303 = vld [vmem:[%s6 + $0x80] sm:$0xff]
    %v304 = vld [vmem:[%s6 + $0x88] sm:$0xff]
    %v305 = vld [vmem:[%s6 + $0x90] sm:$0xff]
    %v306 = vld [vmem:[%s6 + $0x98] sm:$0xff]
    %v307 = vld [vmem:[%s6 + $0xa0] sm:$0xff]
    %v308 = vld [vmem:[%s6 + $0xa8] sm:$0xff]
    %v309 = vld [vmem:[%s6 + $0xb0] sm:$0xff]
    %v310 = vld [vmem:[%s6 + $0xb8] sm:$0xff]
    %v311 = vld [vmem:[%s6 + $0xc0] sm:$0xff]
    %v312 = vld [vmem:[%s6 + $0xc8] sm:$0xff]
    %v313 = vld [vmem:[%s6 + $0xd0] sm:$0xff]
    %v314 = vld [vmem:[%s6 + $0xd8] sm:$0xff]
    %v315 = vld [vmem:[%s6 + $0xe0] sm:$0xff]
    %v316 = vld [vmem:[%s6 + $0xe8] sm:$0xff]
    %v317 = vld [vmem:[%s6 + $0xf0] sm:$0xff]
    %v318 = vld [vmem:[%s6 + $0xf8] sm:$0xff]
    %v319 = vld [vmem:[%s7] sm:$0x1]
    %v321 = vlaneseq
    %v322 = vshrl.u32 %v321, 7
    %v323 = vsub.s32 0, %v322
    %v324 = vrot.slane %v319, %v323
    %326 = vmatprep.subr.mxu0 0.0
    %327 = vmatpush1.msra.mxu0 %v287
    %328 = vmatprep.subr.mxu0 0.0
    %329 = vmatpush1.msra.mxu0 %v288
    %330 = vmatprep.subr.mxu0 0.0
    %331 = vmatpush1.msra.mxu0 %v289
    %332 = vmatprep.subr.mxu0 0.0
    %333 = vmatpush1.msra.mxu0 %v290
    %334 = vmatprep.subr.mxu0 0.0
    %335 = vmatpush1.msra.mxu0 %v291
    %336 = vmatprep.subr.mxu0 0.0
    %337 = vmatpush1.msra.mxu0 %v292
    %338 = vmatprep.subr.mxu0 0.0
    %339 = vmatpush1.msra.mxu0 %v293
    %340 = vmatprep.subr.mxu0 0.0
    %341 = vmatpush1.msra.mxu0 %v294
    %342 = vmatprep.subr.mxu0 0.0
    %343 = vmatpush1.msra.mxu0 %v295
    %344 = vmatprep.subr.mxu0 0.0
    %345 = vmatpush1.msra.mxu0 %v296
    %346 = vmatprep.subr.mxu0 0.0
    %347 = vmatpush1.msra.mxu0 %v297
    %348 = vmatprep.subr.mxu0 0.0
    %349 = vmatpush1.msra.mxu0 %v298
    %350 = vmatprep.subr.mxu0 0.0
    %351 = vmatpush1.msra.mxu0 %v299
    %352 = vmatprep.subr.mxu0 0.0
    %353 = vmatpush1.msra.mxu0 %v300
    %354 = vmatprep.subr.mxu0 0.0
    %355 = vmatpush1.msra.mxu0 %v301
    %356 = vmatprep.subr.mxu0 0.0
    %357 = vmatpush1.msra.mxu0 %v302
    %358 = vmatprep.subr.mxu0 0.0
    %359 = vmatpush1.msra.mxu0 %v303
    %360 = vmatprep.subr.mxu0 0.0
    %361 = vmatpush1.msra.mxu0 %v304
    %362 = vmatprep.subr.mxu0 0.0
    %363 = vmatpush1.msra.mxu0 %v305
    %364 = vmatprep.subr.mxu0 0.0
    %365 = vmatpush1.msra.mxu0 %v306
    %366 = vmatprep.subr.mxu0 0.0
    %367 = vmatpush1.msra.mxu0 %v307
    %368 = vmatprep.subr.mxu0 0.0
    %369 = vmatpush1.msra.mxu0 %v308
    %370 = vmatprep.subr.mxu0 0.0
    %371 = vmatpush1.msra.mxu0 %v309
    %372 = vmatprep.subr.mxu0 0.0
    %373 = vmatpush1.msra.mxu0 %v310
    %374 = vmatprep.subr.mxu0 0.0
    %375 = vmatpush1.msra.mxu0 %v311
    %376 = vmatprep.subr.mxu0 0.0
    %377 = vmatpush1.msra.mxu0 %v312
    %378 = vmatprep.subr.mxu0 0.0
    %379 = vmatpush1.msra.mxu0 %v313
    %380 = vmatprep.subr.mxu0 0.0
    %381 = vmatpush1.msra.mxu0 %v314
    %382 = vmatprep.subr.mxu0 0.0
    %383 = vmatpush1.msra.mxu0 %v315
    %384 = vmatprep.subr.mxu0 0.0
    %385 = vmatpush1.msra.mxu0 %v316
    %386 = vmatprep.subr.mxu0 0.0
    %387 = vmatpush1.msra.mxu0 %v317
    %388 = vmatprep.subr.mxu0 0.0
    %389 = vmatpush1.msra.mxu0 %v318
    %390 = vmatprep.mubr.f32.mxu0 %v286
    %391 = vmatmul.mubr.f32.gmra.mrb[0].mxu0 %v285
    %v392 = vpop.f32.mrb[0].mxu0
    %v393 = vadd.f32 %v324, %v392
    %v394 = vpop.f32.mrb[0].mxu0
    %395 = vdwg.mxu0
    %s396 = sld [smem:[#allocation2]]
    %v397 = vtanh.pop %v393
    %v398 = vstv %s396
    %v399 = vmul.f32 %v398, %v397
    %vm400 = vcmask 31744
    %401 = vst.msk [vmem:[%s8] sm:$0xff] %vm400, %v399
    // Predicated region
    $region38: #{actor_forward.1} parent=1 // pred_check
      _
    $region39: #{actor_forward.1} parent=1 // pred_check_branch
      %403 = sbr.rel (0) target = $region41
    $region40: #{actor_forward.1} parent=1 // pred_region
      _
    $region41: #{actor_forward.1} parent=1 // pred_fallthru
      _
    // Predicated region
    $region42: #{actor_forward.1} parent=1 // pred_check
      _
    $region43: #{actor_forward.1} parent=1 // pred_check_branch
      %405 = sbr.rel (0) target = $region45
    $region44: #{actor_forward.1} parent=1 // pred_region
      _
    $region45: #{actor_forward.1} parent=1 // pred_fallthru
      _
    %406 = vsyncpa [#allocation4], 1

</llo_original>
